<compile_context>
chip_gen: v7x
topology: tpu7x:2x2x1
jax: 0.10.0
libtpu: 0.0.40
codegen_flags: <defaults>
</compile_context>

<pallas_src>
import functools

import jax
import jax.numpy as jnp
from jax import lax
from jax.experimental import pallas as pl
from jax.experimental.pallas import tpu as pltpu


# ---------------------------------------------------------------------------
# Kernel variants
# ---------------------------------------------------------------------------
def _streamed_kernel_resident(mid_ref, x_ref, w_ref, b_ref, o_ref, *, n_layers):
    """Whole per-model weight stack resident in VMEM (n_chunks == 1).

    Grid: (num_row_tiles,).  Activations live in vregs for the whole layer
    loop and are written to the output block exactly once — no f32
    accumulator scratch, no store-then-reload.
    """
    del mid_ref  # only consumed by the index maps
    y = x_ref[...].astype(jnp.float32)
    for l in range(n_layers):                       # static unroll
        w = w_ref[l]                                # (F, F)   compute dtype (bf16)
        b = b_ref[l].reshape(1, -1)                 # (1, F)   float32
        y = jnp.dot(y.astype(w.dtype), w, preferred_element_type=jnp.float32) + b
        y = jnp.maximum(y, 0.0)                     # ReLU after every layer
    o_ref[...] = y.astype(o_ref.dtype)


def _streamed_kernel_chunked(mid_ref, x_ref, w_ref, b_ref, o_ref, acc_ref, *,
                             layer_chunk):
    """Weights streamed in `layer_chunk`-layer chunks (n_chunks > 1).

    Grid: (num_row_tiles, n_chunks), layer-chunk axis innermost ("arbitrary").
    The f32 accumulator scratch is only written when another chunk follows,
    and chunk 0 seeds the activation from x_ref via lax.cond (no
    store-then-reload through VMEM).
    """
    del mid_ref
    li = pl.program_id(1)
    last = pl.num_programs(1) - 1

    y = lax.cond(li == 0,
                 lambda: x_ref[...].astype(jnp.float32),
                 lambda: acc_ref[...])
    for j in range(layer_chunk):                    # static unroll
        w = w_ref[j]                                # (F, F)
        b = b_ref[j]                                # (1, F) float32
        y = jnp.dot(y.astype(w.dtype), w, preferred_element_type=jnp.float32) + b
        y = jnp.maximum(y, 0.0)

    @pl.when(li < last)
    def _():
        acc_ref[...] = y

    @pl.when(li == last)
    def _():
        o_ref[...] = y.astype(o_ref.dtype)


# ---------------------------------------------------------------------------
# Wrapper
# ---------------------------------------------------------------------------
def _vmem_capacity_bytes():
    try:
        return int(pltpu.get_tpu_info().vmem_capacity_bytes)
    except Exception:
        return 64 * 1024 * 1024        # conservative floor (v7x per-TensorCore)


def streamed_forward(x, Ws, bs, slices, *, tile_rows=None,
                     compute_dtype=jnp.bfloat16):
    """x: [N, F]; Ws: [n_models, n_layers, F, F]; bs: [n_models, n_layers, F].

    slices: list of (start, stop) contiguous row ranges, one per model.
    Returns the concatenation of per-model outputs in slice order
    (torch.cat semantics).  Pass `Ws` already cast to `compute_dtype` to keep
    the weight cast out of the per-call hot path.
    """
    N, F = x.shape
    n_models, n_layers = Ws.shape[0], Ws.shape[1]
    assert Ws.shape == (n_models, n_layers, F, F)
    assert bs.shape == (n_models, n_layers, F)
    assert len(slices) <= n_models

    w_dtype = jnp.dtype(compute_dtype) if compute_dtype is not None else Ws.dtype
    # Only fires if the caller did not pre-cast (perf: do it once outside).
    Wc = Ws if Ws.dtype == w_dtype else Ws.astype(w_dtype)

    pos = [(m, int(s), int(e)) for m, (s, e) in enumerate(slices) if e > s]
    if not pos:
        return jnp.zeros((0, F), x.dtype)
    lens = [e - s for _, s, e in pos]

    # ---- hardware-aware sizing --------------------------------------------
    vmem_cap = _vmem_capacity_bytes()
    usable = int(0.85 * vmem_cap)        # leave headroom for Mosaic internals
    headroom = 2 * 1024 * 1024

    if tile_rows is None:
        # Large tiles amortize per-grid-step overhead and weight re-streaming
        # (v6e is the most HBM-bound); small tiles limit padding waste when
        # per-model slices are small.
        tile_rows = 128
        for cand in (1024, 512, 256, 128):
            waste = sum((-l) % cand for l in lens)
            if waste <= 0.25 * sum(lens):
                tile_rows = cand
                break
    tile_rows = max(8, ((int(tile_rows) + 7) // 8) * 8)

    w_bytes = jnp.dtype(w_dtype).itemsize
    x_bytes = jnp.dtype(x.dtype).itemsize

    # Per-model resident weight budget: ~35% of physical VMEM (~44 MiB on
    # v5e/v6e, ~22 MiB on v7x).  Full residency => same-model tiles skip the
    # weight DMA entirely.
    weight_budget = int(0.35 * vmem_cap)
    layer_chunk = 1
    for c in range(n_layers, 0, -1):
        if n_layers % c == 0 and 2 * c * F * F * w_bytes <= weight_budget:
            layer_chunk = c
            break
    n_chunks = n_layers // layer_chunk

    # Deeper weight buffering hides the big weight DMA while streaming chunks
    # (only on 128 MiB VMEM chips; v7x's 64 MiB can't spare a third buffer).
    weight_bufs = 3 if (n_chunks > 1 and vmem_cap >= 100 * 1024 * 1024) else 2

    def vmem_needed(tr, lc, nchunks, wbuf):
        return (2 * tr * F * x_bytes                   # x blocks (double buffered)
                + 2 * tr * F * x_bytes                 # out blocks
                + wbuf * lc * F * F * w_bytes          # weight blocks
                + wbuf * lc * 8 * F * 4                # bias blocks (sublane pad)
                + (tr * F * 4 if nchunks > 1 else 0))  # f32 accumulator scratch

    # Fit the working set; shrink instead of silently clamping the VMEM limit.
    while vmem_needed(tile_rows, layer_chunk, n_chunks, weight_bufs) + headroom > usable:
        if tile_rows > 64:
            tile_rows = max(64, (tile_rows // 2) // 8 * 8)
        elif layer_chunk > 1:
            layer_chunk = max(c for c in range(1, layer_chunk) if n_layers % c == 0)
            n_chunks = n_layers // layer_chunk
            weight_bufs = 2
        else:
            raise ValueError(
                "Streamed kernel working set does not fit VMEM: "
                f"{vmem_needed(tile_rows, layer_chunk, n_chunks, weight_bufs)} B "
                f"needed, {usable} B usable of {vmem_cap} B; reduce n_features.")

    # ---- route rows --------------------------------------------------------
    covers_in_order = (pos[0][1] == 0 and pos[-1][2] == N and
                       all(pos[k][2] == pos[k + 1][1] for k in range(len(pos) - 1)))
    no_pad = all(l % tile_rows == 0 for l in lens)

    tile_mids, extract = [], []
    if covers_in_order and no_pad:
        # Fast path: no gather-in / scatter-out copies at all.
        x_pad = x
        off = 0
        for m, s, e in pos:
            tile_mids.extend([m] * ((e - s) // tile_rows))
            extract.append((off, e - s))
            off += e - s
        passthrough = True
    else:
        # General path: pad each model's rows to a tile multiple so tiles
        # never straddle models; padding is dropped after the call.
        parts = []
        off = 0
        for m, s, e in pos:
            n_m = e - s
            n_p = ((n_m + tile_rows - 1) // tile_rows) * tile_rows
            seg = x[s:e]
            if n_p > n_m:
                seg = jnp.concatenate(
                    [seg, jnp.zeros((n_p - n_m, F), x.dtype)], axis=0)
            parts.append(seg)
            tile_mids.extend([m] * (n_p // tile_rows))
            extract.append((off, n_m))
            off += n_p
        x_pad = jnp.concatenate(parts, axis=0)
        passthrough = False

    mids = jnp.asarray(tile_mids, dtype=jnp.int32)
    num_tiles = x_pad.shape[0] // tile_rows

    need = vmem_needed(tile_rows, layer_chunk, n_chunks, weight_bufs)
    vmem_limit = min(usable, max(min(32 * 1024 * 1024, usable),
                                 int(1.5 * need) + headroom))
    out_shape = jax.ShapeDtypeStruct((x_pad.shape[0], F), x.dtype)

    if n_chunks == 1:
        # --- resident variant: whole per-model stack in VMEM ----------------
        bs3 = bs.astype(jnp.float32)                     # (n_models, n_layers, F)
        grid_spec = pltpu.PrefetchScalarGridSpec(
            num_scalar_prefetch=1,
            grid=(num_tiles,),
            in_specs=[
                pl.BlockSpec((tile_rows, F), lambda i, mid: (i, 0)),
                pl.BlockSpec((None, n_layers, F, F),
                             lambda i, mid: (mid[i], 0, 0, 0)),
                pl.BlockSpec((None, n_layers, F),
                             lambda i, mid: (mid[i], 0, 0)),
            ],
            out_specs=pl.BlockSpec((tile_rows, F), lambda i, mid: (i, 0)),
        )
        out_pad = pl.pallas_call(
            functools.partial(_streamed_kernel_resident, n_layers=n_layers),
            out_shape=out_shape,
            grid_spec=grid_spec,
            compiler_params=pltpu.CompilerParams(
                dimension_semantics=("parallel",),
                vmem_limit_bytes=vmem_limit),
        )(mids, x_pad, Wc, bs3)
    else:
        # --- chunked variant: stream layer chunks on an inner axis ----------
        bs4 = bs.astype(jnp.float32).reshape(n_models, n_layers, 1, F)
        if weight_bufs != 2:
            w_spec = pl.BlockSpec((None, layer_chunk, F, F),
                                  lambda i, li, mid: (mid[i], li, 0, 0),
                                  pipeline_mode=pl.Buffered(weight_bufs))
        else:
            w_spec = pl.BlockSpec((None, layer_chunk, F, F),
                                  lambda i, li, mid: (mid[i], li, 0, 0))
        grid_spec = pltpu.PrefetchScalarGridSpec(
            num_scalar_prefetch=1,
            grid=(num_tiles, n_chunks),
            in_specs=[
                pl.BlockSpec((tile_rows, F), lambda i, li, mid: (i, 0)),
                w_spec,
                pl.BlockSpec((None, layer_chunk, 1, F),
                             lambda i, li, mid: (mid[i], li, 0, 0)),
            ],
            out_specs=pl.BlockSpec((tile_rows, F), lambda i, li, mid: (i, 0)),
            scratch_shapes=[pltpu.VMEM((tile_rows, F), jnp.float32)],
        )
        out_pad = pl.pallas_call(
            functools.partial(_streamed_kernel_chunked, layer_chunk=layer_chunk),
            out_shape=out_shape,
            grid_spec=grid_spec,
            compiler_params=pltpu.CompilerParams(
                dimension_semantics=("parallel", "arbitrary"),
                vmem_limit_bytes=vmem_limit),
        )(mids, x_pad, Wc, bs4)

    if passthrough:
        return out_pad
    return jnp.concatenate([out_pad[o:o + n] for (o, n) in extract], axis=0)


# ---------------------------------------------------------------------------
# Pure-JAX reference (mirrors kernel numerics: bf16 MXU operands, f32 accum)
# ---------------------------------------------------------------------------
def streamed_reference(x, Ws, bs, slices, compute_dtype=jnp.bfloat16):
    w_dtype = jnp.dtype(compute_dtype) if compute_dtype is not None else Ws.dtype
    Wc = Ws.astype(w_dtype)
    parts = []
    for m, (s, e) in enumerate(slices):
        if e <= s:
            continue
        y = x[s:e].astype(jnp.float32)
        for l in range(Ws.shape[1]):
            y = jnp.dot(y.astype(w_dtype), Wc[m, l],
                        preferred_element_type=jnp.float32)
            y = jnp.maximum(y + bs[m, l][None, :].astype(jnp.float32), 0.0)
        parts.append(y.astype(x.dtype))
    return jnp.concatenate(parts, axis=0)


if __name__ == "__main__":
    n_features = 128          # lane-dense (multiple of 128)
    n_models = 2
    n_layers = 3
    N = 640
    slices = [(0, 300), (300, 640)]      # deliberately not tile-aligned

    key = jax.random.PRNGKey(0)
    kx, kw, kb = jax.random.split(key, 3)
    x = jax.random.normal(kx, (N, n_features), dtype=jnp.float32)
    # Module __init__ uses nn.Linear default init; deterministic random values
    # are used instead so the kernel computes something non-trivial.
    Ws = 0.1 * jax.random.normal(
        kw, (n_models, n_layers, n_features, n_features), dtype=jnp.float32)
    bs = 0.1 * jax.random.normal(
        kb, (n_models, n_layers, n_features), dtype=jnp.float32)

    # Perf: cast weights to the MXU compute dtype ONCE, outside the per-call
    # hot path (review item #1).
    Ws_bf16 = Ws.astype(jnp.bfloat16)

    out = streamed_forward(x, Ws_bf16, bs, slices, compute_dtype=jnp.bfloat16)
    out = jax.block_until_ready(out)

    ref = streamed_reference(x, Ws, bs, slices)
    assert out.shape == ref.shape == (N, n_features)
    max_err = float(jnp.max(jnp.abs(out - ref)))
    assert jnp.allclose(out, ref, atol=1e-2, rtol=1e-2), max_err
    print("KERNEL_OK")
</pallas_src>

<mosaic_0001>
module attributes {stable_mosaic.version = 11 : i64} {
  func.func @_streamed_kernel_resident(%arg0: i32, %arg1: memref<6xi32, #tpu.memory_space<smem>>, %arg2: memref<128x128xf32, #tpu.memory_space<vmem>>, %arg3: memref<1x3x128x128xbf16, #tpu.memory_space<vmem>>, %arg4: memref<1x3x128xf32, #tpu.memory_space<vmem>>, %arg5: memref<128x128xf32, #tpu.memory_space<vmem>>) attributes {dimension_semantics = [#tpu.dimension_semantics<parallel>], iteration_bounds = array<i64: 6>, scalar_prefetch = 1 : i64, scratch_operands = 0 : i64, tpu.core_type = #tpu.core_type<tc>, window_params = [{transform_indices = @transform_0, window_bounds = array<i64: 128, 128>}, {transform_indices = @transform_1, window_bounds = array<i64: 1, 3, 128, 128>}, {transform_indices = @transform_2, window_bounds = array<i64: 1, 3, 128>}, {transform_indices = @transform_3, window_bounds = array<i64: 128, 128>}]} {
    %c0 = arith.constant 0 : index
    %c0_0 = arith.constant 0 : index
    %0 = vector.load %arg2[%c0, %c0_0] : memref<128x128xf32, #tpu.memory_space<vmem>>, vector<128x128xf32>
    %c0_1 = arith.constant 0 : index
    %c0_2 = arith.constant 0 : index
    %c0_3 = arith.constant 0 : index
    %c0_4 = arith.constant 0 : index
    %1 = vector.load %arg3[%c0_1, %c0_2, %c0_3, %c0_4] : memref<1x3x128x128xbf16, #tpu.memory_space<vmem>>, vector<1x1x128x128xbf16>
    %2 = vector.shape_cast %1 : vector<1x1x128x128xbf16> to vector<128x128xbf16>
    %c0_5 = arith.constant 0 : index
    %c0_6 = arith.constant 0 : index
    %c0_7 = arith.constant 0 : index
    %3 = vector.load %arg4[%c0_5, %c0_6, %c0_7] : memref<1x3x128xf32, #tpu.memory_space<vmem>>, vector<1x1x128xf32>
    %4 = vector.shape_cast %3 : vector<1x1x128xf32> to vector<128xf32>
    %5 = vector.shape_cast %4 : vector<128xf32> to vector<1x128xf32>
    %6 = arith.truncf %0 : vector<128x128xf32> to vector<128x128xbf16>
    %cst = arith.constant dense<0.000000e+00> : vector<128x128xf32>
    %7 = tpu.matmul %6, %2, %cst {dimension_numbers = #tpu.dot_dimension_numbers<[1], [0], [0], [1], [0, 0, 1, 1], [], []>} : vector<128x128xbf16>, vector<128x128xbf16>, vector<128x128xf32> -> vector<128x128xf32>
    %8 = vector.broadcast %5 : vector<1x128xf32> to vector<128x128xf32>
    %9 = arith.addf %7, %8 : vector<128x128xf32>
    %cst_8 = arith.constant 0.000000e+00 : f32
    %10 = vector.broadcast %cst_8 : f32 to vector<128x128xf32>
    %11 = arith.maximumf %9, %10 : vector<128x128xf32>
    %c0_9 = arith.constant 0 : index
    %c1 = arith.constant 1 : index
    %c0_10 = arith.constant 0 : index
    %c0_11 = arith.constant 0 : index
    %12 = vector.load %arg3[%c0_9, %c1, %c0_10, %c0_11] : memref<1x3x128x128xbf16, #tpu.memory_space<vmem>>, vector<1x1x128x128xbf16>
    %13 = vector.shape_cast %12 : vector<1x1x128x128xbf16> to vector<128x128xbf16>
    %c0_12 = arith.constant 0 : index
    %c1_13 = arith.constant 1 : index
    %c0_14 = arith.constant 0 : index
    %14 = vector.load %arg4[%c0_12, %c1_13, %c0_14] : memref<1x3x128xf32, #tpu.memory_space<vmem>>, vector<1x1x128xf32>
    %15 = vector.shape_cast %14 : vector<1x1x128xf32> to vector<128xf32>
    %16 = vector.shape_cast %15 : vector<128xf32> to vector<1x128xf32>
    %17 = arith.truncf %11 : vector<128x128xf32> to vector<128x128xbf16>
    %cst_15 = arith.constant dense<0.000000e+00> : vector<128x128xf32>
    %18 = tpu.matmul %17, %13, %cst_15 {dimension_numbers = #tpu.dot_dimension_numbers<[1], [0], [0], [1], [0, 0, 1, 1], [], []>} : vector<128x128xbf16>, vector<128x128xbf16>, vector<128x128xf32> -> vector<128x128xf32>
    %19 = vector.broadcast %16 : vector<1x128xf32> to vector<128x128xf32>
    %20 = arith.addf %18, %19 : vector<128x128xf32>
    %cst_16 = arith.constant 0.000000e+00 : f32
    %21 = vector.broadcast %cst_16 : f32 to vector<128x128xf32>
    %22 = arith.maximumf %20, %21 : vector<128x128xf32>
    %c0_17 = arith.constant 0 : index
    %c2 = arith.constant 2 : index
    %c0_18 = arith.constant 0 : index
    %c0_19 = arith.constant 0 : index
    %23 = vector.load %arg3[%c0_17, %c2, %c0_18, %c0_19] : memref<1x3x128x128xbf16, #tpu.memory_space<vmem>>, vector<1x1x128x128xbf16>
    %24 = vector.shape_cast %23 : vector<1x1x128x128xbf16> to vector<128x128xbf16>
    %c0_20 = arith.constant 0 : index
    %c2_21 = arith.constant 2 : index
    %c0_22 = arith.constant 0 : index
    %25 = vector.load %arg4[%c0_20, %c2_21, %c0_22] : memref<1x3x128xf32, #tpu.memory_space<vmem>>, vector<1x1x128xf32>
    %26 = vector.shape_cast %25 : vector<1x1x128xf32> to vector<128xf32>
    %27 = vector.shape_cast %26 : vector<128xf32> to vector<1x128xf32>
    %28 = arith.truncf %22 : vector<128x128xf32> to vector<128x128xbf16>
    %cst_23 = arith.constant dense<0.000000e+00> : vector<128x128xf32>
    %29 = tpu.matmul %28, %24, %cst_23 {dimension_numbers = #tpu.dot_dimension_numbers<[1], [0], [0], [1], [0, 0, 1, 1], [], []>} : vector<128x128xbf16>, vector<128x128xbf16>, vector<128x128xf32> -> vector<128x128xf32>
    %30 = vector.broadcast %27 : vector<1x128xf32> to vector<128x128xf32>
    %31 = arith.addf %29, %30 : vector<128x128xf32>
    %cst_24 = arith.constant 0.000000e+00 : f32
    %32 = vector.broadcast %cst_24 : f32 to vector<128x128xf32>
    %33 = arith.maximumf %31, %32 : vector<128x128xf32>
    %c0_25 = arith.constant 0 : index
    %c0_26 = arith.constant 0 : index
    %34 = vector.load %arg5[%c0_25, %c0_26] : memref<128x128xf32, #tpu.memory_space<vmem>>, vector<128x128xf32>
    tpu.vector_store %arg5[%c0_25, %c0_26], %33 {strides = array<i32>} : memref<128x128xf32, #tpu.memory_space<vmem>>, vector<128x128xf32>,
    return
  }
  func.func @transform_0(%arg0: i32, %arg1: memref<6xi32, #tpu.memory_space<smem>>) -> (i32, i32) {
    %c0_i32 = arith.constant 0 : i32
    %c0_i32_0 = arith.constant 0 : i32
    return %arg0, %c0_i32 : i32, i32
  }
  func.func @transform_1(%arg0: i32, %arg1: memref<6xi32, #tpu.memory_space<smem>>) -> (i32, i32, i32, i32) {
    %0 = arith.index_cast %arg0 : i32 to index
    %1 = memref.load %arg1[%0] : memref<6xi32, #tpu.memory_space<smem>>
    %c0_i32 = arith.constant 0 : i32
    %c0_i32_0 = arith.constant 0 : i32
    %c0_i32_1 = arith.constant 0 : i32
    %c0_i32_2 = arith.constant 0 : i32
    return %1, %c0_i32, %c0_i32_0, %c0_i32_1 : i32, i32, i32, i32
  }
  func.func @transform_2(%arg0: i32, %arg1: memref<6xi32, #tpu.memory_space<smem>>) -> (i32, i32, i32) {
    %0 = arith.index_cast %arg0 : i32 to index
    %1 = memref.load %arg1[%0] : memref<6xi32, #tpu.memory_space<smem>>
    %c0_i32 = arith.constant 0 : i32
    %c0_i32_0 = arith.constant 0 : i32
    %c0_i32_1 = arith.constant 0 : i32
    return %1, %c0_i32, %c0_i32_0 : i32, i32, i32
  }
  func.func @transform_3(%arg0: i32, %arg1: memref<6xi32, #tpu.memory_space<smem>>) -> (i32, i32) {
    %c0_i32 = arith.constant 0 : i32
    %c0_i32_0 = arith.constant 0 : i32
    return %arg0, %c0_i32 : i32, i32
  }
}

</mosaic_0001>

<llo_original>
// kernel: tpu_custom_call.1
$region0: #{tpu_custom_call.1}
  #allocation0 [shape = 'u32[]', space=smem, size = 0x4, offset = 0x4, fixed_abs, tag = 'smem constant byte address 0x4 - core index']
  #allocation1 [shape = 'u32[144,128]{1,0:T(1,128)}', space=vmem, size = 0x12000, scoped, tag = 'internal scratch']
  #allocation2 [shape = 's32[1]{0}', space=sflag, size = 0x4, scoped, tag = 'scoped memory for tpu_custom_call.1']
  #allocation3 [shape = 'u8[512]{0}', space=smem, size = 0x200, scoped, tag = 'prefetched SMEM operand 0']
  %s0 = inlined_call_operand.vmem [shape: s32[6], index: 0, kind: input, shape index: {}]
  %s1 = inlined_call_operand.hbm [shape: f32[768,128], index: 1, kind: input, shape index: {}]
  %s2 = inlined_call_operand.hbm [shape: bf16[2,3,128,128], index: 2, kind: input, shape index: {}]
  %s3 = inlined_call_operand.vmem [shape: f32[2,3,128], index: 3, kind: input, shape index: {}]
  %s4 = inlined_call_operand.hbm [shape: f32[768,128], index: 4, kind: output, shape index: {}]
  %s5 = sld [smem:[#allocation0]]
  $region53: #{tpu_custom_call.1} parent=0
    _
  %s7 = ssub.s32 1, %s5
  %s8 = scalar_select 0, %s7, %s5
  %s9 = sshll.u32 %s0, 4
  %s10 = int_to_ptr.vmem [resolvable:$true] %s9
  %12 = dma.vmem_to_smem %s10, 16, [#allocation3], [#allocation2]
  %13 = dma.done [#allocation2], 16
  %14 = sfence
  $region1: #{tpu_custom_call.1} parent=0
    #allocation4 [shape = 'u8[131072]{0}', space=vmem, size = 0x20000, scoped, tag = 'input window, operand 1']
    #allocation5 [shape = 's32[2]{0}', space=sflag, size = 0x8, scoped, tag = 'scoped memory for tpu_custom_call.1']
    #allocation6 [shape = 's32[2]{0}', space=sflag, size = 0x8, scoped, tag = 'scoped memory for tpu_custom_call.1']
    #allocation7 [shape = 'u8[196608]{0}', space=vmem, size = 0x30000, scoped, tag = 'input window, operand 2']
    #allocation8 [shape = 's32[2]{0}', space=sflag, size = 0x8, scoped, tag = 'scoped memory for tpu_custom_call.1']
    #allocation9 [shape = 'u8[131072]{0}', space=vmem, size = 0x20000, scoped, tag = 'output window, operand 0']
    %15 = vsyncpa [#allocation5], 0
    %s16 = scalar_lea.sflag [#allocation5], 1
    %17 = vsyncpa %s16, 0
    %18 = vsyncpa [#allocation8], 0
    %s19 = scalar_lea.sflag [#allocation8], 1
    %20 = vsyncpa %s19, 0
    %21 = vsyncpa [#allocation6], 0
    %s22 = scalar_lea.sflag [#allocation6], 1
    %23 = vsyncpa %s22, 0
    loop: start=0, step=1, limit=8
    $region2: #{tpu_custom_call.1} parent=1 // loop_pre_header
      _
    $region3: #{tpu_custom_call.1} parent=1 // loop_header
      %s25 = sphi 0, %s29
      %p26 = scmp.ge.s32.totalorder %s25, 8
      %s35 = sphi 0, %s37
      %s38 = sphi 0, %s35
      %s39 = sphi 0, %s38
      %s55 = sphi 0, %s39
      %s63 = sphi 0, %s65
      %s66 = sphi 0, %s63
      %s67 = sphi 0, %s66
      %s83 = sphi 0, %s67
      %s91 = sphi 0, %s93
      %s94 = sphi 0, %s91
      %s95 = sphi 0, %s94
      %s111 = sphi 0, %s95
      %s117 = sphi 0, %s119
      %s120 = sphi 0, %s117
      %s121 = sphi 0, %s120
      %s137 = sphi 0, %s121
    $region4: #{tpu_custom_call.1} parent=1 // loop_header_branch
      %28 = sbr.rel (%p26) target = $region8
    $region5: #{tpu_custom_call.1} parent=1 // loop_body
      %s30 = ssub.s32 %s25, 1
      %s31 = ssub.s32 %s25, 2
      %s32 = sadd.s32 %s25, 1
      %s33 = ssub.s32 %s25, %s32
      %p34 = scmp.eq.s32.totalorder %s33, 0
      %s36 = sadd.s32 %s35, 1
      %s37 = scalar_select %p34, %s35, %s36
      %p40 = pneg %p34
      %p41 = scmp.eq.s32.totalorder %s25, 5
      %p42 = por %p40, %p41
      %p43 = scmp.ne.s32.totalorder %s35, %s38
      %p44 = scmp.eq.s32.totalorder %s25, 0
      %p45 = por %p43, %p44
      %p46 = scmp.ne.s32.totalorder %s35, %s38
      %p47 = scmp.eq.s32.totalorder %s30, 5
      %p48 = por %p46, %p47
      %p49 = scmp.ne.s32.totalorder %s38, %s39
      %p50 = scmp.eq.s32.totalorder %s30, 0
      %p51 = por %p49, %p50
      %p52 = scmp.ne.s32.totalorder %s38, %s39
      %p53 = scmp.eq.s32.totalorder %s31, 5
      %p54 = por %p52, %p53
      %p56 = scmp.ne.s32.totalorder %s39, %s55
      %p57 = scmp.eq.s32.totalorder %s31, 0
      %p58 = por %p56, %p57
      %s59 = sld [smem:[#allocation3 + %s25]]
      %s60 = sld [smem:[#allocation3 + %s32]]
      %s61 = ssub.s32 %s59, %s60
      %p62 = scmp.eq.s32.totalorder %s61, 0
      %s64 = sadd.s32 %s63, 1
      %s65 = scalar_select %p62, %s63, %s64
      %p68 = pneg %p62
      %p69 = scmp.eq.s32.totalorder %s25, 5
      %p70 = por %p68, %p69
      %p71 = scmp.ne.s32.totalorder %s63, %s66
      %p72 = scmp.eq.s32.totalorder %s25, 0
      %p73 = por %p71, %p72
      %p74 = scmp.ne.s32.totalorder %s63, %s66
      %p75 = scmp.eq.s32.totalorder %s30, 5
      %p76 = por %p74, %p75
      %p77 = scmp.ne.s32.totalorder %s66, %s67
      %p78 = scmp.eq.s32.totalorder %s30, 0
      %p79 = por %p77, %p78
      %p80 = scmp.ne.s32.totalorder %s66, %s67
      %p81 = scmp.eq.s32.totalorder %s31, 5
      %p82 = por %p80, %p81
      %p84 = scmp.ne.s32.totalorder %s67, %s83
      %p85 = scmp.eq.s32.totalorder %s31, 0
      %p86 = por %p84, %p85
      %s87 = sld [smem:[#allocation3 + %s25]]
      %s88 = sld [smem:[#allocation3 + %s32]]
      %s89 = ssub.s32 %s87, %s88
      %p90 = scmp.eq.s32.totalorder %s89, 0
      %s92 = sadd.s32 %s91, 1
      %s93 = scalar_select %p90, %s91, %s92
      %p96 = pneg %p90
      %p97 = scmp.eq.s32.totalorder %s25, 5
      %p98 = por %p96, %p97
      %p99 = scmp.ne.s32.totalorder %s91, %s94
      %p100 = scmp.eq.s32.totalorder %s25, 0
      %p101 = por %p99, %p100
      %p102 = scmp.ne.s32.totalorder %s91, %s94
      %p103 = scmp.eq.s32.totalorder %s30, 5
      %p104 = por %p102, %p103
      %p105 = scmp.ne.s32.totalorder %s94, %s95
      %p106 = scmp.eq.s32.totalorder %s30, 0
      %p107 = por %p105, %p106
      %p108 = scmp.ne.s32.totalorder %s94, %s95
      %p109 = scmp.eq.s32.totalorder %s31, 5
      %p110 = por %p108, %p109
      %p112 = scmp.ne.s32.totalorder %s95, %s111
      %p113 = scmp.eq.s32.totalorder %s31, 0
      %p114 = por %p112, %p113
      %s115 = ssub.s32 %s25, %s32
      %p116 = scmp.eq.s32.totalorder %s115, 0
      %s118 = sadd.s32 %s117, 1
      %s119 = scalar_select %p116, %s117, %s118
      %p122 = pneg %p116
      %p123 = scmp.eq.s32.totalorder %s25, 5
      %p124 = por %p122, %p123
      %p125 = scmp.ne.s32.totalorder %s117, %s120
      %p126 = scmp.eq.s32.totalorder %s25, 0
      %p127 = por %p125, %p126
      %p128 = scmp.ne.s32.totalorder %s117, %s120
      %p129 = scmp.eq.s32.totalorder %s30, 5
      %p130 = por %p128, %p129
      %p131 = scmp.ne.s32.totalorder %s120, %s121
      %p132 = scmp.eq.s32.totalorder %s30, 0
      %p133 = por %p131, %p132
      %p134 = scmp.ne.s32.totalorder %s120, %s121
      %p135 = scmp.eq.s32.totalorder %s31, 5
      %p136 = por %p134, %p135
      %p138 = scmp.ne.s32.totalorder %s121, %s137
      %p139 = scmp.eq.s32.totalorder %s31, 0
      %p140 = por %p138, %p139
      %p141 = scmp.le.s32.totalorder 1, %s25
      %p142 = scmp.lt.s32.totalorder %s25, 7
      %p143 = pnand %p141, %p142
      %p144 = pneg %p143
      // Predicated region
      $region9: #{tpu_custom_call.1} parent=5 // pred_check
        _
      $region10: #{tpu_custom_call.1} parent=5 // pred_check_branch
        %146 = sbr.rel (%p143) target = $region12
      $region11: #{tpu_custom_call.1} parent=5 // pred_region
        %s147 = ssub.s32 %s25, 1
      $region12: #{tpu_custom_call.1} parent=5 // pred_fallthru
        _
      %p148 = scmp.lt.s32.totalorder %s25, 6
      // Predicated region
      $region13: #{tpu_custom_call.1} parent=5 // pred_check
        %p149 = pneg %p148
      $region14: #{tpu_custom_call.1} parent=5 // pred_check_branch
        %151 = sbr.rel (%p149) target = $region16
      $region15: #{tpu_custom_call.1} parent=5 // pred_region
        // Predicated region
        $region17: #{tpu_custom_call.1} parent=15 // pred_check
          %p152 = pneg %p45
        $region18: #{tpu_custom_call.1} parent=15 // pred_check_branch
          %154 = sbr.rel (%p152) target = $region20
        $region19: #{tpu_custom_call.1} parent=15 // pred_region
          %s155 = sand.u32 %s35, 1
          %s156 = scalar_lea.sflag [#allocation5], %s155
          %s157 = sand.u32 %s35, 1
          %s158 = smul.addr %s157, 128
          %s159 = scalar_lea.vmem [#allocation4], %s158
          %s160 = smul.u32 16, %s25
          %s162 = ssub.s32 2048, 2048
          %163 = vsyncadd %s156, %s162
          %s164 = smul.addr %s160, 128
          %s165 = scalar_lea.hbm %s1, %s164
          %s166 = sshll.u32 %s159, 4
          %s167 = int_to_ptr.vmem [resolvable:$true] %s166
          %172 = dma.hbm_to_vmem [thread:$0]  %s165, 2048, %s167, %s156, 128, 128, 8
        $region20: #{tpu_custom_call.1} parent=15 // pred_fallthru
          _
        // Predicated region
        $region21: #{tpu_custom_call.1} parent=15 // pred_check
          %p173 = pneg %p73
        $region22: #{tpu_custom_call.1} parent=15 // pred_check_branch
          %175 = sbr.rel (%p173) target = $region24
        $region23: #{tpu_custom_call.1} parent=15 // pred_region
          %s176 = sand.u32 %s63, 1
          %s177 = scalar_lea.sflag [#allocation8], %s176
          %s178 = sand.u32 %s63, 1
          %s179 = smul.addr %s178, 192
          %s180 = scalar_lea.vmem [#allocation7], %s179
          %s181 = sld [smem:[#allocation3 + %s25]]
          %s183 = ssub.s32 3072, 3072
          %184 = vsyncadd %s177, %s183
          %s185 = smul.addr %s181, 48
          %s186 = smul.addr %s185, 64
          %s187 = scalar_lea.hbm %s2, %s186
          %s188 = sshll.u32 %s180, 4
          %s189 = int_to_ptr.vmem [resolvable:$true] %s188
          %194 = dma.hbm_to_vmem [thread:$0]  %s187, 3072, %s189, %s177, 64, 64, 4
        $region24: #{tpu_custom_call.1} parent=15 // pred_fallthru
          _
        // Predicated region
        $region25: #{tpu_custom_call.1} parent=15 // pred_check
          %p195 = pneg %p101
        $region26: #{tpu_custom_call.1} parent=15 // pred_check_branch
          %197 = sbr.rel (%p195) target = $region28
        $region27: #{tpu_custom_call.1} parent=15 // pred_region
          %s198 = sld [smem:[#allocation3 + %s25]]
          %p199 = scmp.lt.s32.totalorder %s198, 1
          %s200 = scalar_select %p199, %s198, 1
          %s201 = smul.addr %s200, 4
          %s202 = scalar_lea.vmem %s3, %s201
          %s203 = sld [smem:[#allocation3 + %s25]]
        $region28: #{tpu_custom_call.1} parent=15 // pred_fallthru
          _
      $region16: #{tpu_custom_call.1} parent=5 // pred_fallthru
        _
      %p204 = scmp.le.s32.totalorder 1, %s25
      %p205 = scmp.lt.s32.totalorder %s25, 7
      %p206 = pnand %p204, %p205
      %p207 = pneg %p206
      // Predicated region
      $region29: #{tpu_custom_call.1} parent=5 // pred_check
        _
      $region30: #{tpu_custom_call.1} parent=5 // pred_check_branch
        %209 = sbr.rel (%p206) target = $region32
      $region31: #{tpu_custom_call.1} parent=5 // pred_region
        %s210 = ssub.s32 %s25, 1
        %s211 = sand.u32 %s38, 1
        %s212 = scalar_lea.sflag [#allocation5], %s211
        %s213 = sand.u32 %s38, 1
        %s214 = smul.addr %s213, 128
        %s215 = scalar_lea.vmem [#allocation4], %s214
        // Predicated region
        $region33: #{tpu_custom_call.1} parent=31 // pred_check
          %p216 = pneg %p51
        $region34: #{tpu_custom_call.1} parent=31 // pred_check_branch
          %218 = sbr.rel (%p216) target = $region36
        $region35: #{tpu_custom_call.1} parent=31 // pred_region
          %219 = dma.done %s212, 2048
        $region36: #{tpu_custom_call.1} parent=31 // pred_fallthru
          _
        %s220 = sand.u32 %s66, 1
        %s221 = scalar_lea.sflag [#allocation8], %s220
        %s222 = sand.u32 %s66, 1
        %s223 = smul.addr %s222, 192
        %s224 = scalar_lea.vmem [#allocation7], %s223
        // Predicated region
        $region37: #{tpu_custom_call.1} parent=31 // pred_check
          %p225 = pneg %p79
        $region38: #{tpu_custom_call.1} parent=31 // pred_check_branch
          %227 = sbr.rel (%p225) target = $region40
        $region39: #{tpu_custom_call.1} parent=31 // pred_region
          %228 = dma.done %s221, 3072
        $region40: #{tpu_custom_call.1} parent=31 // pred_fallthru
          _
        %s229 = sand.u32 %s38, 1
        %s230 = scalar_lea.sflag [#allocation5], %s229
        %s231 = sand.u32 %s38, 1
        %s232 = smul.addr %s231, 128
        %s233 = scalar_lea.vmem [#allocation4], %s232
        %p234 = pneg %p51
        %p235 = pneg %p48
        %s236 = sand.u32 %s66, 1
        %s237 = scalar_lea.sflag [#allocation8], %s236
        %s238 = sand.u32 %s66, 1
        %s239 = smul.addr %s238, 192
        %s240 = scalar_lea.vmem [#allocation7], %s239
        %p241 = pneg %p79
        %p242 = pneg %p76
        %s243 = sld [smem:[#allocation3 + %s30]]
        %p244 = scmp.lt.s32.totalorder %s243, 1
        %s245 = scalar_select %p244, %s243, 1
        %s246 = smul.addr %s245, 4
        %s247 = scalar_lea.vmem %s3, %s246
        %p248 = pneg %p107
        %p249 = pneg %p104
        %p250 = pneg %p133
        %p251 = pneg %p130
        %s252 = sand.u32 %s120, 1
        %s253 = scalar_lea.sflag [#allocation6], %s252
        %s254 = sand.u32 %s120, 1
        %s255 = smul.addr %s254, 128
        %s256 = scalar_lea.vmem [#allocation9], %s255
        %s257 = smul.u32 16, %s30
        %s258 = sld [smem:[#allocation3 + %s30]]
        %s259 = sld [smem:[#allocation3 + %s30]]
        %p260 = scmp.lt.s32.totalorder %s259, 1
        %s261 = scalar_select %p260, %s259, 1
        %s262 = smul.addr %s261, 4
        %s263 = scalar_lea.vmem %s3, %s262
        %s264 = sld [smem:[#allocation3 + %s30]]
        %s265 = smul.u32 16, %s30
        %v267 = vld [vmem:[%s215] sm:$0xff]
        %v268 = vld [vmem:[%s215 + $0x8] sm:$0xff]
        %v269 = vld [vmem:[%s215 + $0x10] sm:$0xff]
        %v270 = vld [vmem:[%s215 + $0x18] sm:$0xff]
        %v271 = vld [vmem:[%s215 + $0x20] sm:$0xff]
        %v272 = vld [vmem:[%s215 + $0x28] sm:$0xff]
        %v273 = vld [vmem:[%s215 + $0x30] sm:$0xff]
        %v274 = vld [vmem:[%s215 + $0x38] sm:$0xff]
        %v275 = vld [vmem:[%s215 + $0x40] sm:$0xff]
        %v276 = vld [vmem:[%s215 + $0x48] sm:$0xff]
        %v277 = vld [vmem:[%s215 + $0x50] sm:$0xff]
        %v278 = vld [vmem:[%s215 + $0x58] sm:$0xff]
        %v279 = vld [vmem:[%s215 + $0x60] sm:$0xff]
        %v280 = vld [vmem:[%s215 + $0x68] sm:$0xff]
        %v281 = vld [vmem:[%s215 + $0x70] sm:$0xff]
        %v282 = vld [vmem:[%s215 + $0x78] sm:$0xff]
        %v283 = vld [vmem:[%s224] sm:$0xf]
        %v284 = vld [vmem:[%s224 + $0x4] sm:$0xf]
        %v285 = vld [vmem:[%s224 + $0x8] sm:$0xf]
        %v286 = vld [vmem:[%s224 + $0xc] sm:$0xf]
        %v287 = vld [vmem:[%s224 + $0x10] sm:$0xf]
        %v288 = vld [vmem:[%s224 + $0x14] sm:$0xf]
        %v289 = vld [vmem:[%s224 + $0x18] sm:$0xf]
        %v290 = vld [vmem:[%s224 + $0x1c] sm:$0xf]
        %v291 = vld [vmem:[%s224 + $0x20] sm:$0xf]
        %v292 = vld [vmem:[%s224 + $0x24] sm:$0xf]
        %v293 = vld [vmem:[%s224 + $0x28] sm:$0xf]
        %v294 = vld [vmem:[%s224 + $0x2c] sm:$0xf]
        %v295 = vld [vmem:[%s224 + $0x30] sm:$0xf]
        %v296 = vld [vmem:[%s224 + $0x34] sm:$0xf]
        %v297 = vld [vmem:[%s224 + $0x38] sm:$0xf]
        %v298 = vld [vmem:[%s224 + $0x3c] sm:$0xf]
        %v299 = vld [vmem:[%s263] sm:$0x1]
        %v300 = vpack.c.bf16 %v268, %v267
        %v301 = vpack.c.bf16 %v270, %v269
        %v302 = vpack.c.bf16 %v272, %v271
        %v303 = vpack.c.bf16 %v274, %v273
        %v304 = vpack.c.bf16 %v276, %v275
        %v305 = vpack.c.bf16 %v278, %v277
        %v306 = vpack.c.bf16 %v280, %v279
        %v307 = vpack.c.bf16 %v282, %v281
        %v308 = vlaneseq
        %v309 = vshrl.u32 %v308, 7
        %v310 = vsub.s32 0, %v309
        %v311 = vrot.slane %v299, %v310
        %v328 = vunpack.c.l.b16 %v283
        %v329 = vunpack.c.l.b16 %v284
        %v330 = vunpack.c.l.b16 %v285
        %v331 = vunpack.c.l.b16 %v286
        %v332 = vunpack.c.l.b16 %v287
        %v333 = vunpack.c.l.b16 %v288
        %v334 = vunpack.c.l.b16 %v289
        %v335 = vunpack.c.l.b16 %v290
        %v336 = vunpack.c.l.b16 %v291
        %v337 = vunpack.c.l.b16 %v292
        %v338 = vunpack.c.l.b16 %v293
        %v339 = vunpack.c.l.b16 %v294
        %v340 = vunpack.c.l.b16 %v295
        %v341 = vunpack.c.l.b16 %v296
        %v342 = vunpack.c.l.b16 %v297
        %v343 = vunpack.c.l.b16 %v298
        %v344 = vpack.c.b16 %v329, %v328
        %v345 = vpack.c.b16 %v331, %v330
        %v346 = vpack.c.b16 %v333, %v332
        %v347 = vpack.c.b16 %v335, %v334
        %v348 = vpack.c.b16 %v337, %v336
        %v349 = vpack.c.b16 %v339, %v338
        %v350 = vpack.c.b16 %v341, %v340
        %v351 = vpack.c.b16 %v343, %v342
        %360 = vmatprep.subr.bf16.mxu0 0
        %361 = vmatpush1.bf16.msra.mxu0 %v344
        %362 = vmatprep.subr.bf16.mxu0 0
        %363 = vmatpush1.bf16.msra.mxu0 %v345
        %364 = vmatprep.subr.bf16.mxu0 0
        %365 = vmatpush1.bf16.msra.mxu0 %v346
        %366 = vmatprep.subr.bf16.mxu0 0
        %367 = vmatpush1.bf16.msra.mxu0 %v347
        %368 = vmatprep.subr.bf16.mxu0 0
        %369 = vmatpush1.bf16.msra.mxu0 %v348
        %370 = vmatprep.subr.bf16.mxu0 0
        %371 = vmatpush1.bf16.msra.mxu0 %v349
        %372 = vmatprep.subr.bf16.mxu0 0
        %373 = vmatpush1.bf16.msra.mxu0 %v350
        %374 = vmatprep.subr.bf16.mxu0 0
        %375 = vmatpush1.bf16.msra.mxu0 %v351
        %376 = vmatprep.subr.bf16.mxu0 0
        %377 = vmatpush1.bf16.msra.mxu0 0
        %378 = vmatprep.subr.bf16.mxu0 0
        %379 = vmatpush1.bf16.msra.mxu0 0
        %380 = vmatprep.subr.bf16.mxu0 0
        %381 = vmatpush1.bf16.msra.mxu0 0
        %382 = vmatprep.subr.bf16.mxu0 0
        %383 = vmatpush1.bf16.msra.mxu0 0
        %384 = vmatprep.subr.bf16.mxu0 0
        %385 = vmatpush1.bf16.msra.mxu0 0
        %386 = vmatprep.subr.bf16.mxu0 0
        %387 = vmatpush1.bf16.msra.mxu0 0
        %388 = vmatprep.subr.bf16.mxu0 0
        %389 = vmatpush1.bf16.msra.mxu0 0
        %390 = vmatprep.subr.bf16.mxu0 0
        %391 = vmatpush1.bf16.msra.mxu0 0
        %392 = vmatprep.mubr.bf16.mxu0 0
        %393 = vmatmul.mubr.bf16.gmra.mrb[0].mxu0 %v300
        %v394 = vpop.f32.mrb[0].mxu0
        %v395 = vadd.f32 %v311, %v394
        %v396 = vpop.f32.mrb[0].mxu0
        %v397 = vpop.f32.mrb[0].mxu0
        %v398 = vadd.f32 %v311, %v397
        %v399 = vpop.f32.mrb[0].mxu0
        %400 = vmatprep.mubr.bf16.mxu0 0
        %401 = vmatmul.mubr.bf16.gmra.mrb[0].mxu0 %v301
        %v402 = vpop.f32.mrb[0].mxu0
        %v403 = vadd.f32 %v311, %v402
        %v404 = vpop.f32.mrb[0].mxu0
        %v405 = vpop.f32.mrb[0].mxu0
        %v406 = vadd.f32 %v311, %v405
        %v407 = vpop.f32.mrb[0].mxu0
        %408 = vmatprep.mubr.bf16.mxu0 0
        %409 = vmatmul.mubr.bf16.gmra.mrb[0].mxu0 %v302
        %v410 = vpop.f32.mrb[0].mxu0
        %v411 = vadd.f32 %v311, %v410
        %v412 = vpop.f32.mrb[0].mxu0
        %v413 = vpop.f32.mrb[0].mxu0
        %v414 = vadd.f32 %v311, %v413
        %v415 = vpop.f32.mrb[0].mxu0
        %416 = vmatprep.mubr.bf16.mxu0 0
        %417 = vmatmul.mubr.bf16.gmra.mrb[0].mxu0 %v303
        %v418 = vpop.f32.mrb[0].mxu0
        %v419 = vadd.f32 %v311, %v418
        %v420 = vpop.f32.mrb[0].mxu0
        %v421 = vpop.f32.mrb[0].mxu0
        %v422 = vadd.f32 %v311, %v421
        %v423 = vpop.f32.mrb[0].mxu0
        %424 = vmatprep.mubr.bf16.mxu0 0
        %425 = vmatmul.mubr.bf16.gmra.mrb[0].mxu0 %v304
        %v426 = vpop.f32.mrb[0].mxu0
        %v427 = vadd.f32 %v311, %v426
        %v428 = vpop.f32.mrb[0].mxu0
        %v429 = vpop.f32.mrb[0].mxu0
        %v430 = vadd.f32 %v311, %v429
        %v431 = vpop.f32.mrb[0].mxu0
        %432 = vmatprep.mubr.bf16.mxu0 0
        %433 = vmatmul.mubr.bf16.gmra.mrb[0].mxu0 %v305
        %v434 = vpop.f32.mrb[0].mxu0
        %v435 = vadd.f32 %v311, %v434
        %v436 = vpop.f32.mrb[0].mxu0
        %v437 = vpop.f32.mrb[0].mxu0
        %v438 = vadd.f32 %v311, %v437
        %v439 = vpop.f32.mrb[0].mxu0
        %440 = vmatprep.mubr.bf16.mxu0 0
        %441 = vmatmul.mubr.bf16.gmra.mrb[0].mxu0 %v306
        %v442 = vpop.f32.mrb[0].mxu0
        %v443 = vadd.f32 %v311, %v442
        %v444 = vpop.f32.mrb[0].mxu0
        %v445 = vpop.f32.mrb[0].mxu0
        %v446 = vadd.f32 %v311, %v445
        %v447 = vpop.f32.mrb[0].mxu0
        %448 = vmatprep.mubr.bf16.mxu0 0
        %449 = vmatmul.mubr.bf16.gmra.mrb[0].mxu0 %v307
        %v450 = vpop.f32.mrb[0].mxu0
        %v451 = vadd.f32 %v311, %v450
        %v452 = vpop.f32.mrb[0].mxu0
        %v453 = vpop.f32.mrb[0].mxu0
        %v454 = vadd.f32 %v311, %v453
        %v455 = vpop.f32.mrb[0].mxu0
        %456 = vdwg.mxu0
        %v457 = vmax.f32 %v395, 0.0
        %v458 = vmax.f32 %v398, 0.0
        %v459 = vmax.f32 %v403, 0.0
        %v460 = vmax.f32 %v406, 0.0
        %v461 = vmax.f32 %v411, 0.0
        %v462 = vmax.f32 %v414, 0.0
        %v463 = vmax.f32 %v419, 0.0
        %v464 = vmax.f32 %v422, 0.0
        %v465 = vmax.f32 %v427, 0.0
        %v466 = vmax.f32 %v430, 0.0
        %v467 = vmax.f32 %v435, 0.0
        %v468 = vmax.f32 %v438, 0.0
        %v469 = vmax.f32 %v443, 0.0
        %v470 = vmax.f32 %v446, 0.0
        %v471 = vmax.f32 %v451, 0.0
        %v472 = vmax.f32 %v454, 0.0
        %s473 = scalar_lea.vmem %s224, 64 [#allocation7]
        %v474 = vld [vmem:[%s473] sm:$0xf]
        %v475 = vld [vmem:[%s473 + $0x4] sm:$0xf]
        %v476 = vld [vmem:[%s473 + $0x8] sm:$0xf]
        %v477 = vld [vmem:[%s473 + $0xc] sm:$0xf]
        %v478 = vld [vmem:[%s473 + $0x10] sm:$0xf]
        %v479 = vld [vmem:[%s473 + $0x14] sm:$0xf]
        %v480 = vld [vmem:[%s473 + $0x18] sm:$0xf]
        %v481 = vld [vmem:[%s473 + $0x1c] sm:$0xf]
        %v482 = vld [vmem:[%s473 + $0x20] sm:$0xf]
        %v483 = vld [vmem:[%s473 + $0x24] sm:$0xf]
        %v484 = vld [vmem:[%s473 + $0x28] sm:$0xf]
        %v485 = vld [vmem:[%s473 + $0x2c] sm:$0xf]
        %v486 = vld [vmem:[%s473 + $0x30] sm:$0xf]
        %v487 = vld [vmem:[%s473 + $0x34] sm:$0xf]
        %v488 = vld [vmem:[%s473 + $0x38] sm:$0xf]
        %v489 = vld [vmem:[%s473 + $0x3c] sm:$0xf]
        %v490 = vld [vmem:[%s263 + $0x1] sm:$0x1]
        %v491 = vpack.c.bf16 %v458, %v457
        %v492 = vpack.c.bf16 %v460, %v459
        %v493 = vpack.c.bf16 %v462, %v461
        %v494 = vpack.c.bf16 %v464, %v463
        %v495 = vpack.c.bf16 %v466, %v465
        %v496 = vpack.c.bf16 %v468, %v467
        %v497 = vpack.c.bf16 %v470, %v469
        %v498 = vpack.c.bf16 %v472, %v471
        %v499 = vlaneseq
        %v500 = vshrl.u32 %v499, 7
        %v501 = vsub.s32 0, %v500
        %v502 = vrot.slane %v490, %v501
        %v519 = vunpack.c.l.b16 %v474
        %v520 = vunpack.c.l.b16 %v475
        %v521 = vunpack.c.l.b16 %v476
        %v522 = vunpack.c.l.b16 %v477
        %v523 = vunpack.c.l.b16 %v478
        %v524 = vunpack.c.l.b16 %v479
        %v525 = vunpack.c.l.b16 %v480
        %v526 = vunpack.c.l.b16 %v481
        %v527 = vunpack.c.l.b16 %v482
        %v528 = vunpack.c.l.b16 %v483
        %v529 = vunpack.c.l.b16 %v484
        %v530 = vunpack.c.l.b16 %v485
        %v531 = vunpack.c.l.b16 %v486
        %v532 = vunpack.c.l.b16 %v487
        %v533 = vunpack.c.l.b16 %v488
        %v534 = vunpack.c.l.b16 %v489
        %v535 = vpack.c.b16 %v520, %v519
        %v536 = vpack.c.b16 %v522, %v521
        %v537 = vpack.c.b16 %v524, %v523
        %v538 = vpack.c.b16 %v526, %v525
        %v539 = vpack.c.b16 %v528, %v527
        %v540 = vpack.c.b16 %v530, %v529
        %v541 = vpack.c.b16 %v532, %v531
        %v542 = vpack.c.b16 %v534, %v533
        %551 = vmatprep.subr.bf16.mxu0 0
        %552 = vmatpush1.bf16.msra.mxu0 %v535
        %553 = vmatprep.subr.bf16.mxu0 0
        %554 = vmatpush1.bf16.msra.mxu0 %v536
        %555 = vmatprep.subr.bf16.mxu0 0
        %556 = vmatpush1.bf16.msra.mxu0 %v537
        %557 = vmatprep.subr.bf16.mxu0 0
        %558 = vmatpush1.bf16.msra.mxu0 %v538
        %559 = vmatprep.subr.bf16.mxu0 0
        %560 = vmatpush1.bf16.msra.mxu0 %v539
        %561 = vmatprep.subr.bf16.mxu0 0
        %562 = vmatpush1.bf16.msra.mxu0 %v540
        %563 = vmatprep.subr.bf16.mxu0 0
        %564 = vmatpush1.bf16.msra.mxu0 %v541
        %565 = vmatprep.subr.bf16.mxu0 0
        %566 = vmatpush1.bf16.msra.mxu0 %v542
        %567 = vmatprep.subr.bf16.mxu0 0
        %568 = vmatpush1.bf16.msra.mxu0 0
        %569 = vmatprep.subr.bf16.mxu0 0
        %570 = vmatpush1.bf16.msra.mxu0 0
        %571 = vmatprep.subr.bf16.mxu0 0
        %572 = vmatpush1.bf16.msra.mxu0 0
        %573 = vmatprep.subr.bf16.mxu0 0
        %574 = vmatpush1.bf16.msra.mxu0 0
        %575 = vmatprep.subr.bf16.mxu0 0
        %576 = vmatpush1.bf16.msra.mxu0 0
        %577 = vmatprep.subr.bf16.mxu0 0
        %578 = vmatpush1.bf16.msra.mxu0 0
        %579 = vmatprep.subr.bf16.mxu0 0
        %580 = vmatpush1.bf16.msra.mxu0 0
        %581 = vmatprep.subr.bf16.mxu0 0
        %582 = vmatpush1.bf16.msra.mxu0 0
        %583 = vmatprep.mubr.bf16.mxu0 0
        %584 = vmatmul.mubr.bf16.gmra.mrb[0].mxu0 %v491
        %v585 = vpop.f32.mrb[0].mxu0
        %v586 = vadd.f32 %v502, %v585
        %v587 = vpop.f32.mrb[0].mxu0
        %v588 = vpop.f32.mrb[0].mxu0
        %v589 = vadd.f32 %v502, %v588
        %v590 = vpop.f32.mrb[0].mxu0
        %591 = vmatprep.mubr.bf16.mxu0 0
        %592 = vmatmul.mubr.bf16.gmra.mrb[0].mxu0 %v492
        %v593 = vpop.f32.mrb[0].mxu0
        %v594 = vadd.f32 %v502, %v593
        %v595 = vpop.f32.mrb[0].mxu0
        %v596 = vpop.f32.mrb[0].mxu0
        %v597 = vadd.f32 %v502, %v596
        %v598 = vpop.f32.mrb[0].mxu0
        %599 = vmatprep.mubr.bf16.mxu0 0
        %600 = vmatmul.mubr.bf16.gmra.mrb[0].mxu0 %v493
        %v601 = vpop.f32.mrb[0].mxu0
        %v602 = vadd.f32 %v502, %v601
        %v603 = vpop.f32.mrb[0].mxu0
        %v604 = vpop.f32.mrb[0].mxu0
        %v605 = vadd.f32 %v502, %v604
        %v606 = vpop.f32.mrb[0].mxu0
        %607 = vmatprep.mubr.bf16.mxu0 0
        %608 = vmatmul.mubr.bf16.gmra.mrb[0].mxu0 %v494
        %v609 = vpop.f32.mrb[0].mxu0
        %v610 = vadd.f32 %v502, %v609
        %v611 = vpop.f32.mrb[0].mxu0
        %v612 = vpop.f32.mrb[0].mxu0
        %v613 = vadd.f32 %v502, %v612
        %v614 = vpop.f32.mrb[0].mxu0
        %615 = vmatprep.mubr.bf16.mxu0 0
        %616 = vmatmul.mubr.bf16.gmra.mrb[0].mxu0 %v495
        %v617 = vpop.f32.mrb[0].mxu0
        %v618 = vadd.f32 %v502, %v617
        %v619 = vpop.f32.mrb[0].mxu0
        %v620 = vpop.f32.mrb[0].mxu0
        %v621 = vadd.f32 %v502, %v620
        %v622 = vpop.f32.mrb[0].mxu0
        %623 = vmatprep.mubr.bf16.mxu0 0
        %624 = vmatmul.mubr.bf16.gmra.mrb[0].mxu0 %v496
        %v625 = vpop.f32.mrb[0].mxu0
        %v626 = vadd.f32 %v502, %v625
        %v627 = vpop.f32.mrb[0].mxu0
        %v628 = vpop.f32.mrb[0].mxu0
        %v629 = vadd.f32 %v502, %v628
        %v630 = vpop.f32.mrb[0].mxu0
        %631 = vmatprep.mubr.bf16.mxu0 0
        %632 = vmatmul.mubr.bf16.gmra.mrb[0].mxu0 %v497
        %v633 = vpop.f32.mrb[0].mxu0
        %v634 = vadd.f32 %v502, %v633
        %v635 = vpop.f32.mrb[0].mxu0
        %v636 = vpop.f32.mrb[0].mxu0
        %v637 = vadd.f32 %v502, %v636
        %v638 = vpop.f32.mrb[0].mxu0
        %639 = vmatprep.mubr.bf16.mxu0 0
        %640 = vmatmul.mubr.bf16.gmra.mrb[0].mxu0 %v498
        %v641 = vpop.f32.mrb[0].mxu0
        %v642 = vadd.f32 %v502, %v641
        %v643 = vpop.f32.mrb[0].mxu0
        %v644 = vpop.f32.mrb[0].mxu0
        %v645 = vadd.f32 %v502, %v644
        %v646 = vpop.f32.mrb[0].mxu0
        %647 = vdwg.mxu0
        %v648 = vmax.f32 %v586, 0.0
        %v649 = vmax.f32 %v589, 0.0
        %v650 = vmax.f32 %v594, 0.0
        %v651 = vmax.f32 %v597, 0.0
        %v652 = vmax.f32 %v602, 0.0
        %v653 = vmax.f32 %v605, 0.0
        %v654 = vmax.f32 %v610, 0.0
        %v655 = vmax.f32 %v613, 0.0
        %v656 = vmax.f32 %v618, 0.0
        %v657 = vmax.f32 %v621, 0.0
        %v658 = vmax.f32 %v626, 0.0
        %v659 = vmax.f32 %v629, 0.0
        %v660 = vmax.f32 %v634, 0.0
        %v661 = vmax.f32 %v637, 0.0
        %v662 = vmax.f32 %v642, 0.0
        %v663 = vmax.f32 %v645, 0.0
        %s664 = scalar_lea.vmem %s224, 128 [#allocation7]
        %v665 = vld [vmem:[%s664] sm:$0xf]
        %v666 = vld [vmem:[%s664 + $0x4] sm:$0xf]
        %v667 = vld [vmem:[%s664 + $0x8] sm:$0xf]
        %v668 = vld [vmem:[%s664 + $0xc] sm:$0xf]
        %v669 = vld [vmem:[%s664 + $0x10] sm:$0xf]
        %v670 = vld [vmem:[%s664 + $0x14] sm:$0xf]
        %v671 = vld [vmem:[%s664 + $0x18] sm:$0xf]
        %v672 = vld [vmem:[%s664 + $0x1c] sm:$0xf]
        %v673 = vld [vmem:[%s664 + $0x20] sm:$0xf]
        %v674 = vld [vmem:[%s664 + $0x24] sm:$0xf]
        %v675 = vld [vmem:[%s664 + $0x28] sm:$0xf]
        %v676 = vld [vmem:[%s664 + $0x2c] sm:$0xf]
        %v677 = vld [vmem:[%s664 + $0x30] sm:$0xf]
        %v678 = vld [vmem:[%s664 + $0x34] sm:$0xf]
        %v679 = vld [vmem:[%s664 + $0x38] sm:$0xf]
        %v680 = vld [vmem:[%s664 + $0x3c] sm:$0xf]
        %v681 = vld [vmem:[%s263 + $0x2] sm:$0x1]
        %v682 = vpack.c.bf16 %v649, %v648
        %v683 = vpack.c.bf16 %v651, %v650
        %v684 = vpack.c.bf16 %v653, %v652
        %v685 = vpack.c.bf16 %v655, %v654
        %v686 = vpack.c.bf16 %v657, %v656
        %v687 = vpack.c.bf16 %v659, %v658
        %v688 = vpack.c.bf16 %v661, %v660
        %v689 = vpack.c.bf16 %v663, %v662
        %v690 = vlaneseq
        %v691 = vshrl.u32 %v690, 7
        %v692 = vsub.s32 0, %v691
        %v693 = vrot.slane %v681, %v692
        %v710 = vunpack.c.l.b16 %v665
        %v711 = vunpack.c.l.b16 %v666
        %v712 = vunpack.c.l.b16 %v667
        %v713 = vunpack.c.l.b16 %v668
        %v714 = vunpack.c.l.b16 %v669
        %v715 = vunpack.c.l.b16 %v670
        %v716 = vunpack.c.l.b16 %v671
        %v717 = vunpack.c.l.b16 %v672
        %v718 = vunpack.c.l.b16 %v673
        %v719 = vunpack.c.l.b16 %v674
        %v720 = vunpack.c.l.b16 %v675
        %v721 = vunpack.c.l.b16 %v676
        %v722 = vunpack.c.l.b16 %v677
        %v723 = vunpack.c.l.b16 %v678
        %v724 = vunpack.c.l.b16 %v679
        %v725 = vunpack.c.l.b16 %v680
        %v726 = vpack.c.b16 %v711, %v710
        %v727 = vpack.c.b16 %v713, %v712
        %v728 = vpack.c.b16 %v715, %v714
        %v729 = vpack.c.b16 %v717, %v716
        %v730 = vpack.c.b16 %v719, %v718
        %v731 = vpack.c.b16 %v721, %v720
        %v732 = vpack.c.b16 %v723, %v722
        %v733 = vpack.c.b16 %v725, %v724
        %742 = vmatprep.subr.bf16.mxu0 0
        %743 = vmatpush1.bf16.msra.mxu0 %v726
        %744 = vmatprep.subr.bf16.mxu0 0
        %745 = vmatpush1.bf16.msra.mxu0 %v727
        %746 = vmatprep.subr.bf16.mxu0 0
        %747 = vmatpush1.bf16.msra.mxu0 %v728
        %748 = vmatprep.subr.bf16.mxu0 0
        %749 = vmatpush1.bf16.msra.mxu0 %v729
        %750 = vmatprep.subr.bf16.mxu0 0
        %751 = vmatpush1.bf16.msra.mxu0 %v730
        %752 = vmatprep.subr.bf16.mxu0 0
        %753 = vmatpush1.bf16.msra.mxu0 %v731
        %754 = vmatprep.subr.bf16.mxu0 0
        %755 = vmatpush1.bf16.msra.mxu0 %v732
        %756 = vmatprep.subr.bf16.mxu0 0
        %757 = vmatpush1.bf16.msra.mxu0 %v733
        %758 = vmatprep.subr.bf16.mxu0 0
        %759 = vmatpush1.bf16.msra.mxu0 0
        %760 = vmatprep.subr.bf16.mxu0 0
        %761 = vmatpush1.bf16.msra.mxu0 0
        %762 = vmatprep.subr.bf16.mxu0 0
        %763 = vmatpush1.bf16.msra.mxu0 0
        %764 = vmatprep.subr.bf16.mxu0 0
        %765 = vmatpush1.bf16.msra.mxu0 0
        %766 = vmatprep.subr.bf16.mxu0 0
        %767 = vmatpush1.bf16.msra.mxu0 0
        %768 = vmatprep.subr.bf16.mxu0 0
        %769 = vmatpush1.bf16.msra.mxu0 0
        %770 = vmatprep.subr.bf16.mxu0 0
        %771 = vmatpush1.bf16.msra.mxu0 0
        %772 = vmatprep.subr.bf16.mxu0 0
        %773 = vmatpush1.bf16.msra.mxu0 0
        %774 = vmatprep.mubr.bf16.mxu0 0
        %775 = vmatmul.mubr.bf16.gmra.mrb[0].mxu0 %v682
        %v776 = vpop.f32.mrb[0].mxu0
        %v777 = vadd.f32 %v693, %v776
        %v778 = vpop.f32.mrb[0].mxu0
        %v779 = vpop.f32.mrb[0].mxu0
        %v780 = vadd.f32 %v693, %v779
        %v781 = vpop.f32.mrb[0].mxu0
        %782 = vmatprep.mubr.bf16.mxu0 0
        %783 = vmatmul.mubr.bf16.gmra.mrb[0].mxu0 %v683
        %v784 = vpop.f32.mrb[0].mxu0
        %v785 = vadd.f32 %v693, %v784
        %v786 = vpop.f32.mrb[0].mxu0
        %v787 = vpop.f32.mrb[0].mxu0
        %v788 = vadd.f32 %v693, %v787
        %v789 = vpop.f32.mrb[0].mxu0
        %790 = vmatprep.mubr.bf16.mxu0 0
        %791 = vmatmul.mubr.bf16.gmra.mrb[0].mxu0 %v684
        %v792 = vpop.f32.mrb[0].mxu0
        %v793 = vadd.f32 %v693, %v792
        %v794 = vpop.f32.mrb[0].mxu0
        %v795 = vpop.f32.mrb[0].mxu0
        %v796 = vadd.f32 %v693, %v795
        %v797 = vpop.f32.mrb[0].mxu0
        %798 = vmatprep.mubr.bf16.mxu0 0
        %799 = vmatmul.mubr.bf16.gmra.mrb[0].mxu0 %v685
        %v800 = vpop.f32.mrb[0].mxu0
        %v801 = vadd.f32 %v693, %v800
        %v802 = vpop.f32.mrb[0].mxu0
        %v803 = vpop.f32.mrb[0].mxu0
        %v804 = vadd.f32 %v693, %v803
        %v805 = vpop.f32.mrb[0].mxu0
        %806 = vmatprep.mubr.bf16.mxu0 0
        %807 = vmatmul.mubr.bf16.gmra.mrb[0].mxu0 %v686
        %v808 = vpop.f32.mrb[0].mxu0
        %v809 = vadd.f32 %v693, %v808
        %v810 = vpop.f32.mrb[0].mxu0
        %v811 = vpop.f32.mrb[0].mxu0
        %v812 = vadd.f32 %v693, %v811
        %v813 = vpop.f32.mrb[0].mxu0
        %814 = vmatprep.mubr.bf16.mxu0 0
        %815 = vmatmul.mubr.bf16.gmra.mrb[0].mxu0 %v687
        %v816 = vpop.f32.mrb[0].mxu0
        %v817 = vadd.f32 %v693, %v816
        %v818 = vpop.f32.mrb[0].mxu0
        %v819 = vpop.f32.mrb[0].mxu0
        %v820 = vadd.f32 %v693, %v819
        %v821 = vpop.f32.mrb[0].mxu0
        %822 = vmatprep.mubr.bf16.mxu0 0
        %823 = vmatmul.mubr.bf16.gmra.mrb[0].mxu0 %v688
        %v824 = vpop.f32.mrb[0].mxu0
        %v825 = vadd.f32 %v693, %v824
        %v826 = vpop.f32.mrb[0].mxu0
        %v827 = vpop.f32.mrb[0].mxu0
        %v828 = vadd.f32 %v693, %v827
        %v829 = vpop.f32.mrb[0].mxu0
        %830 = vmatprep.mubr.bf16.mxu0 0
        %831 = vmatmul.mubr.bf16.gmra.mrb[0].mxu0 %v689
        %v832 = vpop.f32.mrb[0].mxu0
        %v833 = vadd.f32 %v693, %v832
        %v834 = vpop.f32.mrb[0].mxu0
        %v835 = vpop.f32.mrb[0].mxu0
        %v836 = vadd.f32 %v693, %v835
        %v837 = vpop.f32.mrb[0].mxu0
        %838 = vdwg.mxu0
        %v839 = vmax.f32 %v777, 0.0
        %v840 = vmax.f32 %v780, 0.0
        %v841 = vmax.f32 %v785, 0.0
        %v842 = vmax.f32 %v788, 0.0
        %v843 = vmax.f32 %v793, 0.0
        %v844 = vmax.f32 %v796, 0.0
        %v845 = vmax.f32 %v801, 0.0
        %v846 = vmax.f32 %v804, 0.0
        %v847 = vmax.f32 %v809, 0.0
        %v848 = vmax.f32 %v812, 0.0
        %v849 = vmax.f32 %v817, 0.0
        %v850 = vmax.f32 %v820, 0.0
        %v851 = vmax.f32 %v825, 0.0
        %v852 = vmax.f32 %v828, 0.0
        %v853 = vmax.f32 %v833, 0.0
        %v854 = vmax.f32 %v836, 0.0
        %855 = vst [vmem:[%s256] sm:$0xff] %v839
        %856 = vst [vmem:[%s256 + $0x8] sm:$0xff] %v840
        %857 = vst [vmem:[%s256 + $0x10] sm:$0xff] %v841
        %858 = vst [vmem:[%s256 + $0x18] sm:$0xff] %v842
        %859 = vst [vmem:[%s256 + $0x20] sm:$0xff] %v843
        %860 = vst [vmem:[%s256 + $0x28] sm:$0xff] %v844
        %861 = vst [vmem:[%s256 + $0x30] sm:$0xff] %v845
        %862 = vst [vmem:[%s256 + $0x38] sm:$0xff] %v846
        %863 = vst [vmem:[%s256 + $0x40] sm:$0xff] %v847
        %864 = vst [vmem:[%s256 + $0x48] sm:$0xff] %v848
        %865 = vst [vmem:[%s256 + $0x50] sm:$0xff] %v849
        %866 = vst [vmem:[%s256 + $0x58] sm:$0xff] %v850
        %867 = vst [vmem:[%s256 + $0x60] sm:$0xff] %v851
        %868 = vst [vmem:[%s256 + $0x68] sm:$0xff] %v852
        %869 = vst [vmem:[%s256 + $0x70] sm:$0xff] %v853
        %870 = vst [vmem:[%s256 + $0x78] sm:$0xff] %v854
        %s871 = sand.u32 %s120, 1
        %s872 = scalar_lea.sflag [#allocation6], %s871
        %s873 = sand.u32 %s120, 1
        %s874 = smul.addr %s873, 128
        %s875 = scalar_lea.vmem [#allocation9], %s874
        // Predicated region
        $region41: #{tpu_custom_call.1} parent=31 // pred_check
          %p876 = pneg %p130
        $region42: #{tpu_custom_call.1} parent=31 // pred_check_branch
          %878 = sbr.rel (%p876) target = $region44
        $region43: #{tpu_custom_call.1} parent=31 // pred_region
          %s879 = smul.u32 16, %s30
          %s881 = ssub.s32 2048, 2048
          %882 = vsyncadd %s872, %s881
          %s883 = smul.addr %s879, 128
          %s884 = scalar_lea.hbm %s4, %s883
          %s885 = sshll.u32 %s875, 4
          %s886 = int_to_ptr.vmem [resolvable:$true] %s885
          %891 = dma.vmem_to_hbm [thread:$0]  %s886, 2048, %s884, %s872, 128, 128, 8
        $region44: #{tpu_custom_call.1} parent=31 // pred_fallthru
          _
      $region32: #{tpu_custom_call.1} parent=5 // pred_fallthru
        _
      %p892 = scmp.le.s32.totalorder 2, %s25
      // Predicated region
      $region45: #{tpu_custom_call.1} parent=5 // pred_check
        %p893 = pneg %p892
      $region46: #{tpu_custom_call.1} parent=5 // pred_check_branch
        %895 = sbr.rel (%p893) target = $region48
      $region47: #{tpu_custom_call.1} parent=5 // pred_region
        %s896 = ssub.s32 %s25, 2
        // Predicated region
        $region49: #{tpu_custom_call.1} parent=47 // pred_check
          %p897 = pneg %p136
        $region50: #{tpu_custom_call.1} parent=47 // pred_check_branch
          %899 = sbr.rel (%p897) target = $region52
        $region51: #{tpu_custom_call.1} parent=47 // pred_region
          %s900 = sand.u32 %s121, 1
          %s901 = scalar_lea.sflag [#allocation6], %s900
          %s902 = sand.u32 %s121, 1
          %s903 = smul.addr %s902, 128
          %s904 = scalar_lea.vmem [#allocation9], %s903
          %905 = dma.done %s901, 2048
        $region52: #{tpu_custom_call.1} parent=47 // pred_fallthru
          _
      $region48: #{tpu_custom_call.1} parent=5 // pred_fallthru
        _
    $region6: #{tpu_custom_call.1} parent=1 // loop_footer
      %s29 = sadd.s32 1, %s25
    $region7: #{tpu_custom_call.1} parent=1 // loop_footer_branch
      %24 = sbr.rel target = $region3
    $region8: #{tpu_custom_call.1} parent=1 // loop_exit
      _
    %906 = vsyncpa [#allocation5], 1
    %s907 = scalar_lea.sflag [#allocation5], 1
    %908 = vsyncpa %s907, 1
    %909 = vsyncpa [#allocation8], 1
    %s910 = scalar_lea.sflag [#allocation8], 1
    %911 = vsyncpa %s910, 1
    %912 = vsyncpa [#allocation6], 1
    %s913 = scalar_lea.sflag [#allocation6], 1
    %914 = vsyncpa %s913, 1

</llo_original>
